<compile_context>
chip_gen: v7x
topology: tpu7x:2x2x1
jax: 0.10.0
libtpu: 0.0.40
codegen_flags: <defaults>
</compile_context>

<pallas_src>
import functools

import jax
import jax.numpy as jnp
from jax.experimental import pallas as pl
from jax.experimental.pallas import tpu as pltpu


# Rough per-element VMEM working set: double-buffered input + output tiles
# (2 * itemsize each) plus ~3 float32 temporaries (x, exp, result).
def _work_bytes_per_elem(itemsize):
    return 4 * itemsize + 12


_TARGET_TILE_BYTES = 4 * 1024 * 1024  # ~4 MiB input tile -> >=85% of HBM roofline
_MIN_GRID_STEPS = 8                   # a few steps per v7x TensorCore


def _softmax_kernel(x_ref, o_ref, *, axis):
    """Softmax over `axis` of the resident block (axis fully in-block)."""
    x = x_ref[...].astype(jnp.float32)
    m = jnp.max(x, axis=axis, keepdims=True)
    e = jnp.exp(x - m)
    s = jnp.sum(e, axis=axis, keepdims=True)
    # One reciprocal per softmax row/column + broadcast multiply instead of a
    # per-element divide (keeps VALU free so compute stays hidden under DMA).
    o_ref[...] = (e * (1.0 / s)).astype(o_ref.dtype)


def _vmem_budget_and_limit():
    """Generation-aware VMEM sizing (v7x: 64 MiB/TC, v5e/v6e: 128 MiB)."""
    try:
        cap = int(pltpu.get_tpu_info().vmem_capacity_bytes)
    except Exception:
        cap = 64 * 1024 * 1024  # conservative fallback (v7x per-TC VMEM)
    budget = cap // 3                         # tile-sizing budget
    limit = min(cap // 2, 64 * 1024 * 1024)   # scoped VMEM limit with headroom
    return budget, limit


def _pick_block_m(M, D, itemsize, budget):
    """Row-tile size for the last-dim (lane-reduction) path."""
    per_row = D * _work_bytes_per_elem(itemsize)
    by_tile = max(1, _TARGET_TILE_BYTES // max(D * itemsize, 1))
    by_budget = max(1, budget // max(per_row, 1))
    block_m = min(by_tile, by_budget)
    if block_m >= M:
        return M  # full extent: single step, no (8,128) constraint issue
    block_m = max(8, (block_m // 8) * 8)  # f32 sublane multiple
    # Guarantee a handful of grid steps (2 TCs on v7x + pipeline overlap).
    if M >= _MIN_GRID_STEPS * 8 and pl.cdiv(M, block_m) < _MIN_GRID_STEPS:
        block_m = max(8, (pl.cdiv(M, _MIN_GRID_STEPS) // 8) * 8)
    return block_m


def _pick_blocks_3d(M, A, N, itemsize, budget):
    """Block sizes for the non-last-dim path: block = (bm, A, bn), reduce A."""
    # Keep the trailing dim lane-dense; A (softmax axis) sits on sublanes.
    if N <= 512:
        bn = N        # full extent (no 128-divisibility requirement)
    else:
        bn = 512      # lane-dense multiple of 128
    per_m = A * bn * _work_bytes_per_elem(itemsize)
    by_tile = max(1, _TARGET_TILE_BYTES // max(A * bn * itemsize, 1))
    by_budget = max(1, budget // max(per_m, 1))
    bm = max(1, min(M, min(by_tile, by_budget)))
    # Keep a few grid steps when the problem allows (v7x megacore sharding).
    if pl.cdiv(M, bm) * pl.cdiv(N, bn) < _MIN_GRID_STEPS and M >= _MIN_GRID_STEPS:
        bm = max(1, pl.cdiv(M, _MIN_GRID_STEPS))
    return bm, bn


@functools.partial(jax.jit, static_argnames=("dim",))
def softmax_forward(x, *, dim=-1):
    """Pallas equivalent of `Softmax(dim)(x)` — no wrapper-side relayout."""
    ndim = x.ndim
    axis = dim % ndim
    shape = x.shape
    itemsize = jnp.dtype(x.dtype).itemsize
    budget, vmem_limit = _vmem_budget_and_limit()

    total = 1
    for d in shape:
        total *= d
    cost = pl.CostEstimate(
        flops=5 * total,            # max, sub, sum, recip, mul (rough)
        transcendentals=total,      # exp
        bytes_accessed=2 * total * itemsize,
    )

    if axis == ndim - 1:
        # ---- last-dim path: softmax along lanes -------------------------
        D = shape[-1]
        M = total // D if D else 0
        x2d = x.reshape(M, D)
        block_m = _pick_block_m(M, D, itemsize, budget)
        grid = (pl.cdiv(M, block_m),)
        out2d = pl.pallas_call(
            functools.partial(_softmax_kernel, axis=-1),
            out_shape=jax.ShapeDtypeStruct((M, D), x.dtype),
            grid_spec=pltpu.PrefetchScalarGridSpec(
                num_scalar_prefetch=0,
                grid=grid,
                in_specs=[pl.BlockSpec((block_m, D), lambda i: (i, 0))],
                out_specs=pl.BlockSpec((block_m, D), lambda i: (i, 0)),
            ),
            compiler_params=pltpu.CompilerParams(
                dimension_semantics=("parallel",),
                vmem_limit_bytes=vmem_limit,
            ),
            cost_estimate=cost,
        )(x2d)
        return out2d.reshape(shape)

    # ---- non-last-dim path: softmax along sublanes (no moveaxis) --------
    A = shape[axis]
    M = 1
    for d in shape[:axis]:
        M *= d
    N = 1
    for d in shape[axis + 1:]:
        N *= d
    x3d = x.reshape(M, A, N)
    bm, bn = _pick_blocks_3d(M, A, N, itemsize, budget)
    grid = (pl.cdiv(M, bm), pl.cdiv(N, bn))
    out3d = pl.pallas_call(
        functools.partial(_softmax_kernel, axis=-2),
        out_shape=jax.ShapeDtypeStruct((M, A, N), x.dtype),
        grid_spec=pltpu.PrefetchScalarGridSpec(
            num_scalar_prefetch=0,
            grid=grid,
            in_specs=[pl.BlockSpec((bm, A, bn), lambda i, j: (i, 0, j))],
            out_specs=pl.BlockSpec((bm, A, bn), lambda i, j: (i, 0, j)),
        ),
        compiler_params=pltpu.CompilerParams(
            dimension_semantics=("parallel", "parallel"),
            vmem_limit_bytes=vmem_limit,
        ),
        cost_estimate=cost,
    )(x3d)
    return out3d.reshape(shape)


if __name__ == "__main__":
    key = jax.random.PRNGKey(0)
    k1, k2 = jax.random.split(key)

    # Softmax over the last (lane) dim: attention-score-like input
    # (batch=2, heads=4, seq=8, hidden=128).
    x1 = jax.random.normal(k1, (2, 4, 8, 128), dtype=jnp.float32)
    y1 = jax.block_until_ready(softmax_forward(x1, dim=-1))
    ref1 = jax.nn.softmax(x1, axis=-1)
    assert y1.shape == x1.shape
    assert jnp.allclose(y1, ref1, atol=1e-6, rtol=1e-5), "dim=-1 mismatch"
    assert jnp.allclose(jnp.sum(y1, axis=-1), 1.0, atol=1e-5), "rows must sum to 1"

    # Softmax over a non-last dim: (batch=2, seq=8, hidden=32), dim=1.
    # Runs in the original layout (no moveaxis): reduction on sublanes,
    # trailing dim stays on lanes.
    x2 = jax.random.normal(k2, (2, 8, 32), dtype=jnp.float32)
    y2 = jax.block_until_ready(softmax_forward(x2, dim=1))
    ref2 = jax.nn.softmax(x2, axis=1)
    assert y2.shape == x2.shape
    assert jnp.allclose(y2, ref2, atol=1e-6, rtol=1e-5), "dim=1 mismatch"
    assert jnp.allclose(jnp.sum(y2, axis=1), 1.0, atol=1e-5), "cols must sum to 1"

    print("KERNEL_OK")
</pallas_src>

<mosaic_0001>
module attributes {stable_mosaic.version = 11 : i64} {
  func.func @_softmax_kernel(%arg0: i32, %arg1: memref<64x128xf32, #tpu.memory_space<vmem>>, %arg2: memref<64x128xf32, #tpu.memory_space<vmem>>) attributes {dimension_semantics = [#tpu.dimension_semantics<parallel>], iteration_bounds = array<i64: 1>, scalar_prefetch = 0 : i64, scratch_operands = 0 : i64, tpu.core_type = #tpu.core_type<tc>, window_params = [{transform_indices = @transform_0, window_bounds = array<i64: 64, 128>}, {transform_indices = @transform_1, window_bounds = array<i64: 64, 128>}]} {
    %c0 = arith.constant 0 : index
    %c0_0 = arith.constant 0 : index
    %0 = vector.load %arg1[%c0, %c0_0] : memref<64x128xf32, #tpu.memory_space<vmem>>, vector<64x128xf32>
    %cst = arith.constant dense<0xFF800000> : vector<64xf32>
    %1 = vector.multi_reduction <maximumf>, %0, %cst [1] : vector<64x128xf32> to vector<64xf32>
    %2 = vector.shape_cast %1 : vector<64xf32> to vector<64x1xf32>
    %3 = vector.broadcast %2 : vector<64x1xf32> to vector<64x128xf32>
    %4 = arith.subf %0, %3 : vector<64x128xf32>
    %5 = math.exp %4 : vector<64x128xf32>
    %cst_1 = arith.constant dense<0.000000e+00> : vector<64xf32>
    %6 = vector.multi_reduction <add>, %5, %cst_1 [1] : vector<64x128xf32> to vector<64xf32>
    %7 = vector.shape_cast %6 : vector<64xf32> to vector<64x1xf32>
    %cst_2 = arith.constant 1.000000e+00 : f32
    %8 = vector.broadcast %cst_2 : f32 to vector<64x1xf32>
    %9 = arith.divf %8, %7 : vector<64x1xf32>
    %10 = vector.broadcast %9 : vector<64x1xf32> to vector<64x128xf32>
    %11 = arith.mulf %5, %10 : vector<64x128xf32>
    %c0_3 = arith.constant 0 : index
    %c0_4 = arith.constant 0 : index
    %12 = vector.load %arg2[%c0_3, %c0_4] : memref<64x128xf32, #tpu.memory_space<vmem>>, vector<64x128xf32>
    tpu.vector_store %arg2[%c0_3, %c0_4], %11 {strides = array<i32>} : memref<64x128xf32, #tpu.memory_space<vmem>>, vector<64x128xf32>,
    return
  }
  func.func @transform_0(%arg0: i32) -> (i32, i32) {
    %c0_i32 = arith.constant 0 : i32
    %c0_i32_0 = arith.constant 0 : i32
    return %arg0, %c0_i32 : i32, i32
  }
  func.func @transform_1(%arg0: i32) -> (i32, i32) {
    %c0_i32 = arith.constant 0 : i32
    %c0_i32_0 = arith.constant 0 : i32
    return %arg0, %c0_i32 : i32, i32
  }
}

</mosaic_0001>

<llo_original>
// kernel: softmax_forward.1
$region0: #{softmax_forward.1}
  #allocation0 [shape = 'u32[]', space=smem, size = 0x4, offset = 0x4, fixed_abs, tag = 'smem constant byte address 0x4 - core index']
  #allocation1 [shape = 'u32[144,128]{1,0:T(1,128)}', space=vmem, size = 0x12000, scoped, tag = 'internal scratch']
  %s0 = inlined_call_operand.hbm [shape: f32[64,128], index: 0, kind: input, shape index: {}]
  %s1 = inlined_call_operand.hbm [shape: f32[64,128], index: 1, kind: output, shape index: {}]
  %s2 = sld [smem:[#allocation0]]
  $region18: #{softmax_forward.1} parent=0
    _
  %s4 = ssub.s32 1, %s2
  %s5 = scalar_select 0, %s4, %s2
  $region1: #{softmax_forward.1} parent=0
    #allocation2 [shape = 'u8[32768]{0}', space=vmem, size = 0x8000, scoped, tag = 'input window, operand 0, single buffered']
    #allocation3 [shape = 's32[1]{0}', space=sflag, size = 0x4, scoped, tag = 'scoped memory for softmax_forward.1']
    #allocation4 [shape = 's32[1]{0}', space=sflag, size = 0x4, scoped, tag = 'scoped memory for softmax_forward.1']
    #allocation5 [shape = 'u8[32768]{0}', space=vmem, size = 0x8000, scoped, tag = 'output window, operand 0, single buffered']
    %6 = vsyncpa [#allocation3], 0
    %7 = vsyncpa [#allocation4], 0
    // Predicated region
    $region2: #{softmax_forward.1} parent=1 // pred_check
      _
    $region3: #{softmax_forward.1} parent=1 // pred_check_branch
      %9 = sbr.rel (0) target = $region5
    $region4: #{softmax_forward.1} parent=1 // pred_region
      %s11 = ssub.s32 1024, 1024
      %12 = vsyncadd [#allocation3], %s11
      %s13 = sshll.u32 [#allocation2], 4
      %s14 = int_to_ptr.vmem [resolvable:$true] %s13
      %19 = dma.hbm_to_vmem [thread:$0]  %s0, 1024, %s14, [#allocation3], 128, 128, 8
    $region5: #{softmax_forward.1} parent=1 // pred_fallthru
      _
    // Predicated region
    $region6: #{softmax_forward.1} parent=1 // pred_check
      _
    $region7: #{softmax_forward.1} parent=1 // pred_check_branch
      %21 = sbr.rel (0) target = $region9
    $region8: #{softmax_forward.1} parent=1 // pred_region
      %22 = dma.done [#allocation3], 1024
    $region9: #{softmax_forward.1} parent=1 // pred_fallthru
      _
    %v23 = vld [vmem:[#allocation2] sm:$0xff]
    %v24 = vld [vmem:[#allocation2 + $0x8] sm:$0xff]
    %v25 = vld [vmem:[#allocation2 + $0x10] sm:$0xff]
    %v26 = vld [vmem:[#allocation2 + $0x18] sm:$0xff]
    %v27 = vld [vmem:[#allocation2 + $0x20] sm:$0xff]
    %v28 = vld [vmem:[#allocation2 + $0x28] sm:$0xff]
    %v29 = vld [vmem:[#allocation2 + $0x30] sm:$0xff]
    %v30 = vld [vmem:[#allocation2 + $0x38] sm:$0xff]
    %31 = vmax.xlane.f32.xlu0 %v23
    %v32 = vpop.xlane.xlu0 %31
    %33 = vmax.xlane.f32.xlu0 %v24
    %v34 = vpop.xlane.xlu0 %33
    %35 = vmax.xlane.f32.xlu0 %v25
    %v36 = vpop.xlane.xlu0 %35
    %37 = vmax.xlane.f32.xlu0 %v26
    %v38 = vpop.xlane.xlu0 %37
    %39 = vmax.xlane.f32.xlu0 %v27
    %v40 = vpop.xlane.xlu0 %39
    %41 = vmax.xlane.f32.xlu0 %v28
    %v42 = vpop.xlane.xlu0 %41
    %43 = vmax.xlane.f32.xlu0 %v29
    %v44 = vpop.xlane.xlu0 %43
    %45 = vmax.xlane.f32.xlu0 %v30
    %v46 = vpop.xlane.xlu0 %45
    %v47 = vsub.f32 %v23, %v32
    %v48 = vsub.f32 %v24, %v34
    %v49 = vsub.f32 %v25, %v36
    %v50 = vsub.f32 %v26, %v38
    %v51 = vsub.f32 %v27, %v40
    %v52 = vsub.f32 %v28, %v42
    %v53 = vsub.f32 %v29, %v44
    %v54 = vsub.f32 %v30, %v46
    %v55 = vmul.f32 %v47, 1.442695
    %v56 = vpow.pop %v55
    %v57 = vmul.f32 %v48, 1.442695
    %v58 = vpow.pop %v57
    %v59 = vmul.f32 %v49, 1.442695
    %v60 = vpow.pop %v59
    %v61 = vmul.f32 %v50, 1.442695
    %v62 = vpow.pop %v61
    %v63 = vmul.f32 %v51, 1.442695
    %v64 = vpow.pop %v63
    %v65 = vmul.f32 %v52, 1.442695
    %v66 = vpow.pop %v65
    %v67 = vmul.f32 %v53, 1.442695
    %v68 = vpow.pop %v67
    %v69 = vmul.f32 %v54, 1.442695
    %v70 = vpow.pop %v69
    %71 = vadd.xlane.f32.xlu0 %v56
    %v72 = vpop.xlane.xlu0 %71
    %73 = vadd.xlane.f32.xlu0 %v58
    %v74 = vpop.xlane.xlu0 %73
    %75 = vadd.xlane.f32.xlu0 %v60
    %v76 = vpop.xlane.xlu0 %75
    %77 = vadd.xlane.f32.xlu0 %v62
    %v78 = vpop.xlane.xlu0 %77
    %79 = vadd.xlane.f32.xlu0 %v64
    %v80 = vpop.xlane.xlu0 %79
    %81 = vadd.xlane.f32.xlu0 %v66
    %v82 = vpop.xlane.xlu0 %81
    %83 = vadd.xlane.f32.xlu0 %v68
    %v84 = vpop.xlane.xlu0 %83
    %85 = vadd.xlane.f32.xlu0 %v70
    %v86 = vpop.xlane.xlu0 %85
    %v87 = vrcp.pop %v72
    %v88 = vmul.f32 1.0, %v87
    %v89 = vrcp.pop %v74
    %v90 = vmul.f32 1.0, %v89
    %v91 = vrcp.pop %v76
    %v92 = vmul.f32 1.0, %v91
    %v93 = vrcp.pop %v78
    %v94 = vmul.f32 1.0, %v93
    %v95 = vrcp.pop %v80
    %v96 = vmul.f32 1.0, %v95
    %v97 = vrcp.pop %v82
    %v98 = vmul.f32 1.0, %v97
    %v99 = vrcp.pop %v84
    %v100 = vmul.f32 1.0, %v99
    %v101 = vrcp.pop %v86
    %v102 = vmul.f32 1.0, %v101
    %v103 = vmul.f32 %v56, %v88
    %v104 = vmul.f32 %v58, %v90
    %v105 = vmul.f32 %v60, %v92
    %v106 = vmul.f32 %v62, %v94
    %v107 = vmul.f32 %v64, %v96
    %v108 = vmul.f32 %v66, %v98
    %v109 = vmul.f32 %v68, %v100
    %v110 = vmul.f32 %v70, %v102
    %111 = vst [vmem:[#allocation5] sm:$0xff] %v103
    %112 = vst [vmem:[#allocation5 + $0x8] sm:$0xff] %v104
    %113 = vst [vmem:[#allocation5 + $0x10] sm:$0xff] %v105
    %114 = vst [vmem:[#allocation5 + $0x18] sm:$0xff] %v106
    %115 = vst [vmem:[#allocation5 + $0x20] sm:$0xff] %v107
    %116 = vst [vmem:[#allocation5 + $0x28] sm:$0xff] %v108
    %117 = vst [vmem:[#allocation5 + $0x30] sm:$0xff] %v109
    %118 = vst [vmem:[#allocation5 + $0x38] sm:$0xff] %v110
    // Predicated region
    $region10: #{softmax_forward.1} parent=1 // pred_check
      _
    $region11: #{softmax_forward.1} parent=1 // pred_check_branch
      %120 = sbr.rel (0) target = $region13
    $region12: #{softmax_forward.1} parent=1 // pred_region
      %s122 = ssub.s32 1024, 1024
      %123 = vsyncadd [#allocation4], %s122
      %s124 = sshll.u32 [#allocation5], 4
      %s125 = int_to_ptr.vmem [resolvable:$true] %s124
      %130 = dma.vmem_to_hbm [thread:$0]  %s125, 1024, %s1, [#allocation4], 128, 128, 8
    $region13: #{softmax_forward.1} parent=1 // pred_fallthru
      _
    // Predicated region
    $region14: #{softmax_forward.1} parent=1 // pred_check
      _
    $region15: #{softmax_forward.1} parent=1 // pred_check_branch
      %132 = sbr.rel (0) target = $region17
    $region16: #{softmax_forward.1} parent=1 // pred_region
      %133 = dma.done [#allocation4], 1024
    $region17: #{softmax_forward.1} parent=1 // pred_fallthru
      _
    %134 = vsyncpa [#allocation3], 1
    %135 = vsyncpa [#allocation4], 1

</llo_original>
